<compile_context>
chip_gen: v6e
topology: v6e:2x2x1
jax: 0.10.0
libtpu: 0.0.40
codegen_flags: <defaults>
</compile_context>

<pallas_src>
import functools

import jax
import jax.numpy as jnp
from jax.experimental import pallas as pl
from jax.experimental.pallas import tpu as pltpu

HIDDEN = 100           # as defined by the PyTorch module
HIDDEN_PAD = 128       # lane-dense padded hidden width
LANES = 128            # TPU lane width; num_quants is padded up to this


def _round_up(x, m):
    return ((x + m - 1) // m) * m


def qrnet_kernel(x_ref, w1_ref, b1_ref, w2_ref, b2_ref, w3_ref, b3_ref, out_ref):
    # Layer 1: Linear(n_features, 128p) + ReLU   (bf16 in, f32 accumulate)
    h1 = jnp.dot(x_ref[...], w1_ref[...], preferred_element_type=jnp.float32)
    h1 = jnp.maximum(h1 + b1_ref[...], 0.0).astype(jnp.bfloat16)
    # Layer 2: Linear(128p, 128p) + ReLU
    h2 = jnp.dot(h1, w2_ref[...], preferred_element_type=jnp.float32)
    h2 = jnp.maximum(h2 + b2_ref[...], 0.0).astype(jnp.bfloat16)
    # Layer 3: Linear(128p, num_quants padded to 128)  (no activation)
    out = jnp.dot(h2, w3_ref[...], preferred_element_type=jnp.float32) + b3_ref[...]
    out_ref[...] = out.astype(out_ref.dtype)


def pad_params_for_kernel(params, num_quants):
    """Zero-pad hidden (100->128) and num_quants (->128) and cast weights to bf16.

    Zero padding keeps results exact: padded bias entries are 0 (ReLU(0)=0) and
    padded weight rows of the next layer are 0, so padded activations never
    contribute to real outputs.
    """
    w1, b1, w2, b2, w3, b3 = params
    n_features = w1.shape[0]
    nq_pad = _round_up(num_quants, LANES)

    w1p = jnp.zeros((n_features, HIDDEN_PAD), jnp.float32).at[:, :HIDDEN].set(w1)
    b1p = jnp.zeros((1, HIDDEN_PAD), jnp.float32).at[:, :HIDDEN].set(b1)
    w2p = jnp.zeros((HIDDEN_PAD, HIDDEN_PAD), jnp.float32).at[:HIDDEN, :HIDDEN].set(w2)
    b2p = jnp.zeros((1, HIDDEN_PAD), jnp.float32).at[:, :HIDDEN].set(b2)
    w3p = jnp.zeros((HIDDEN_PAD, nq_pad), jnp.float32).at[:HIDDEN, :num_quants].set(w3)
    b3p = jnp.zeros((1, nq_pad), jnp.float32).at[:, :num_quants].set(b3)

    # Weights in bf16 (MXU rate, half the HBM traffic); biases stay f32 so they
    # are added after the f32 accumulation.
    return (w1p.astype(jnp.bfloat16), b1p,
            w2p.astype(jnp.bfloat16), b2p,
            w3p.astype(jnp.bfloat16), b3p)


@functools.partial(jax.jit, static_argnames=("num_quants", "tile_b"))
def qrnet_forward(x, padded_params, *, num_quants, tile_b=512):
    """x: (B, n_features) float32 -> (B, num_quants) float32."""
    w1, b1, w2, b2, w3, b3 = padded_params
    batch, n_features = x.shape
    nq_pad = w3.shape[1]

    # Batch tile: multiple of 8 (sublane rule); cap by requested tile size.
    tb = min(tile_b, _round_up(batch, 8))
    b_pad = _round_up(batch, tb)

    x_pad = x.astype(jnp.bfloat16)
    if b_pad != batch:
        x_pad = jnp.pad(x_pad, ((0, b_pad - batch), (0, 0)))

    grid = (b_pad // tb,)

    # Streamed operands: x / out tiles over the batch grid.
    x_spec = pl.BlockSpec((tb, n_features), lambda i: (i, 0))
    out_spec = pl.BlockSpec((tb, nq_pad), lambda i: (i, 0))
    # VMEM-resident weights/biases: constant block index across the grid.
    w_specs = [
        pl.BlockSpec((n_features, HIDDEN_PAD), lambda i: (0, 0)),  # w1
        pl.BlockSpec((1, HIDDEN_PAD), lambda i: (0, 0)),           # b1
        pl.BlockSpec((HIDDEN_PAD, HIDDEN_PAD), lambda i: (0, 0)),  # w2
        pl.BlockSpec((1, HIDDEN_PAD), lambda i: (0, 0)),           # b2
        pl.BlockSpec((HIDDEN_PAD, nq_pad), lambda i: (0, 0)),      # w3
        pl.BlockSpec((1, nq_pad), lambda i: (0, 0)),               # b3
    ]

    flops = 2 * b_pad * (n_features * HIDDEN_PAD
                         + HIDDEN_PAD * HIDDEN_PAD
                         + HIDDEN_PAD * nq_pad)
    bytes_accessed = (
        b_pad * n_features * 2            # x (bf16)
        + b_pad * nq_pad * 4              # out (f32)
        + (n_features * HIDDEN_PAD + HIDDEN_PAD * HIDDEN_PAD
           + HIDDEN_PAD * nq_pad) * 2     # weights (bf16)
        + (2 * HIDDEN_PAD + nq_pad) * 4   # biases (f32)
    )

    out_padded = pl.pallas_call(
        qrnet_kernel,
        out_shape=jax.ShapeDtypeStruct((b_pad, nq_pad), jnp.float32),
        grid=grid,
        in_specs=[x_spec] + w_specs,
        out_specs=out_spec,
        compiler_params=pltpu.CompilerParams(
            dimension_semantics=("parallel",)),
        cost_estimate=pl.CostEstimate(
            flops=flops, transcendentals=0, bytes_accessed=bytes_accessed),
    )(x_pad, w1, b1, w2, b2, w3, b3)

    return out_padded[:batch, :num_quants]


def init_qrnet_params(key, n_features, num_quants, mean_prior, std_prior):
    """normal(mean_prior, std_prior) init, matching the module's init_weights."""
    ks = jax.random.split(key, 6)
    w1 = mean_prior + std_prior * jax.random.normal(ks[0], (n_features, HIDDEN), jnp.float32)
    b1 = mean_prior + std_prior * jax.random.normal(ks[1], (1, HIDDEN), jnp.float32)
    w2 = mean_prior + std_prior * jax.random.normal(ks[2], (HIDDEN, HIDDEN), jnp.float32)
    b2 = mean_prior + std_prior * jax.random.normal(ks[3], (1, HIDDEN), jnp.float32)
    w3 = mean_prior + std_prior * jax.random.normal(ks[4], (HIDDEN, num_quants), jnp.float32)
    b3 = mean_prior + std_prior * jax.random.normal(ks[5], (1, num_quants), jnp.float32)
    return (w1, b1, w2, b2, w3, b3)


def qrnet_reference(x, params):
    """Pure-JAX f32 reference for correctness checking."""
    w1, b1, w2, b2, w3, b3 = params
    h1 = jnp.maximum(x @ w1 + b1, 0.0)
    h2 = jnp.maximum(h1 @ w2 + b2, 0.0)
    return h2 @ w3 + b3


if __name__ == "__main__":
    key = jax.random.PRNGKey(0)
    k_x, k_p = jax.random.split(key)

    batch = 8
    n_features = 16
    num_quants = 8
    mean_prior = 0.0
    std_prior = 0.1

    x = jax.random.normal(k_x, (batch, n_features), jnp.float32)
    params = init_qrnet_params(k_p, n_features, num_quants, mean_prior, std_prior)
    padded_params = pad_params_for_kernel(params, num_quants)

    out = qrnet_forward(x, padded_params, num_quants=num_quants)
    out = jax.block_until_ready(out)

    ref = qrnet_reference(x, params)
    assert out.shape == (batch, num_quants)
    # bf16 inputs/weights with f32 accumulation: loose-ish tolerance vs f32 ref.
    assert jnp.allclose(out, ref, atol=2e-2, rtol=2e-2), float(jnp.max(jnp.abs(out - ref)))

    print("KERNEL_OK")
</pallas_src>

<mosaic_0001>
module attributes {stable_mosaic.version = 11 : i64} {
  func.func @qrnet_kernel(%arg0: i32, %arg1: memref<8x16xbf16, #tpu.memory_space<vmem>>, %arg2: memref<16x128xbf16, #tpu.memory_space<vmem>>, %arg3: memref<1x128xf32, #tpu.memory_space<vmem>>, %arg4: memref<128x128xbf16, #tpu.memory_space<vmem>>, %arg5: memref<1x128xf32, #tpu.memory_space<vmem>>, %arg6: memref<128x128xbf16, #tpu.memory_space<vmem>>, %arg7: memref<1x128xf32, #tpu.memory_space<vmem>>, %arg8: memref<8x128xf32, #tpu.memory_space<vmem>>) attributes {dimension_semantics = [#tpu.dimension_semantics<parallel>], iteration_bounds = array<i64: 1>, scalar_prefetch = 0 : i64, scratch_operands = 0 : i64, tpu.core_type = #tpu.core_type<tc>, window_params = [{transform_indices = @transform_0, window_bounds = array<i64: 8, 16>}, {pipeline_mode = #tpu.pipeline_mode<synchronous>, transform_indices = @transform_1, window_bounds = array<i64: 16, 128>}, {pipeline_mode = #tpu.pipeline_mode<synchronous>, transform_indices = @transform_2, window_bounds = array<i64: 1, 128>}, {pipeline_mode = #tpu.pipeline_mode<synchronous>, transform_indices = @transform_3, window_bounds = array<i64: 128, 128>}, {pipeline_mode = #tpu.pipeline_mode<synchronous>, transform_indices = @transform_4, window_bounds = array<i64: 1, 128>}, {pipeline_mode = #tpu.pipeline_mode<synchronous>, transform_indices = @transform_5, window_bounds = array<i64: 128, 128>}, {pipeline_mode = #tpu.pipeline_mode<synchronous>, transform_indices = @transform_6, window_bounds = array<i64: 1, 128>}, {transform_indices = @transform_7, window_bounds = array<i64: 8, 128>}]} {
    %c0 = arith.constant 0 : index
    %c0_0 = arith.constant 0 : index
    %0 = vector.load %arg1[%c0, %c0_0] : memref<8x16xbf16, #tpu.memory_space<vmem>>, vector<8x16xbf16>
    %c0_1 = arith.constant 0 : index
    %c0_2 = arith.constant 0 : index
    %1 = vector.load %arg2[%c0_1, %c0_2] : memref<16x128xbf16, #tpu.memory_space<vmem>>, vector<16x128xbf16>
    %cst = arith.constant dense<0.000000e+00> : vector<8x128xf32>
    %2 = tpu.matmul %0, %1, %cst {dimension_numbers = #tpu.dot_dimension_numbers<[1], [0], [0], [1], [0, 0, 1, 1], [], []>} : vector<8x16xbf16>, vector<16x128xbf16>, vector<8x128xf32> -> vector<8x128xf32>
    %c0_3 = arith.constant 0 : index
    %c0_4 = arith.constant 0 : index
    %3 = vector.load %arg3[%c0_3, %c0_4] : memref<1x128xf32, #tpu.memory_space<vmem>>, vector<1x128xf32>
    %4 = vector.broadcast %3 : vector<1x128xf32> to vector<8x128xf32>
    %5 = arith.addf %2, %4 : vector<8x128xf32>
    %cst_5 = arith.constant 0.000000e+00 : f32
    %6 = vector.broadcast %cst_5 : f32 to vector<8x128xf32>
    %7 = arith.maximumf %5, %6 : vector<8x128xf32>
    %8 = arith.truncf %7 : vector<8x128xf32> to vector<8x128xbf16>
    %c0_6 = arith.constant 0 : index
    %c0_7 = arith.constant 0 : index
    %9 = vector.load %arg4[%c0_6, %c0_7] : memref<128x128xbf16, #tpu.memory_space<vmem>>, vector<128x128xbf16>
    %cst_8 = arith.constant dense<0.000000e+00> : vector<8x128xf32>
    %10 = tpu.matmul %8, %9, %cst_8 {dimension_numbers = #tpu.dot_dimension_numbers<[1], [0], [0], [1], [0, 0, 1, 1], [], []>} : vector<8x128xbf16>, vector<128x128xbf16>, vector<8x128xf32> -> vector<8x128xf32>
    %c0_9 = arith.constant 0 : index
    %c0_10 = arith.constant 0 : index
    %11 = vector.load %arg5[%c0_9, %c0_10] : memref<1x128xf32, #tpu.memory_space<vmem>>, vector<1x128xf32>
    %12 = vector.broadcast %11 : vector<1x128xf32> to vector<8x128xf32>
    %13 = arith.addf %10, %12 : vector<8x128xf32>
    %cst_11 = arith.constant 0.000000e+00 : f32
    %14 = vector.broadcast %cst_11 : f32 to vector<8x128xf32>
    %15 = arith.maximumf %13, %14 : vector<8x128xf32>
    %16 = arith.truncf %15 : vector<8x128xf32> to vector<8x128xbf16>
    %c0_12 = arith.constant 0 : index
    %c0_13 = arith.constant 0 : index
    %17 = vector.load %arg6[%c0_12, %c0_13] : memref<128x128xbf16, #tpu.memory_space<vmem>>, vector<128x128xbf16>
    %cst_14 = arith.constant dense<0.000000e+00> : vector<8x128xf32>
    %18 = tpu.matmul %16, %17, %cst_14 {dimension_numbers = #tpu.dot_dimension_numbers<[1], [0], [0], [1], [0, 0, 1, 1], [], []>} : vector<8x128xbf16>, vector<128x128xbf16>, vector<8x128xf32> -> vector<8x128xf32>
    %c0_15 = arith.constant 0 : index
    %c0_16 = arith.constant 0 : index
    %19 = vector.load %arg7[%c0_15, %c0_16] : memref<1x128xf32, #tpu.memory_space<vmem>>, vector<1x128xf32>
    %20 = vector.broadcast %19 : vector<1x128xf32> to vector<8x128xf32>
    %21 = arith.addf %18, %20 : vector<8x128xf32>
    %c0_17 = arith.constant 0 : index
    %c0_18 = arith.constant 0 : index
    %22 = vector.load %arg8[%c0_17, %c0_18] : memref<8x128xf32, #tpu.memory_space<vmem>>, vector<8x128xf32>
    tpu.vector_store %arg8[%c0_17, %c0_18], %21 {strides = array<i32>} : memref<8x128xf32, #tpu.memory_space<vmem>>, vector<8x128xf32>,
    return
  }
  func.func @transform_0(%arg0: i32) -> (i32, i32) {
    %c0_i32 = arith.constant 0 : i32
    %c0_i32_0 = arith.constant 0 : i32
    return %arg0, %c0_i32 : i32, i32
  }
  func.func @transform_1(%arg0: i32) -> (i32, i32) {
    %c0_i32 = arith.constant 0 : i32
    %c0_i32_0 = arith.constant 0 : i32
    %c0_i32_1 = arith.constant 0 : i32
    return %c0_i32, %c0_i32_0 : i32, i32
  }
  func.func @transform_2(%arg0: i32) -> (i32, i32) {
    %c0_i32 = arith.constant 0 : i32
    %c0_i32_0 = arith.constant 0 : i32
    %c0_i32_1 = arith.constant 0 : i32
    return %c0_i32, %c0_i32_0 : i32, i32
  }
  func.func @transform_3(%arg0: i32) -> (i32, i32) {
    %c0_i32 = arith.constant 0 : i32
    %c0_i32_0 = arith.constant 0 : i32
    %c0_i32_1 = arith.constant 0 : i32
    return %c0_i32, %c0_i32_0 : i32, i32
  }
  func.func @transform_4(%arg0: i32) -> (i32, i32) {
    %c0_i32 = arith.constant 0 : i32
    %c0_i32_0 = arith.constant 0 : i32
    %c0_i32_1 = arith.constant 0 : i32
    return %c0_i32, %c0_i32_0 : i32, i32
  }
  func.func @transform_5(%arg0: i32) -> (i32, i32) {
    %c0_i32 = arith.constant 0 : i32
    %c0_i32_0 = arith.constant 0 : i32
    %c0_i32_1 = arith.constant 0 : i32
    return %c0_i32, %c0_i32_0 : i32, i32
  }
  func.func @transform_6(%arg0: i32) -> (i32, i32) {
    %c0_i32 = arith.constant 0 : i32
    %c0_i32_0 = arith.constant 0 : i32
    %c0_i32_1 = arith.constant 0 : i32
    return %c0_i32, %c0_i32_0 : i32, i32
  }
  func.func @transform_7(%arg0: i32) -> (i32, i32) {
    %c0_i32 = arith.constant 0 : i32
    %c0_i32_0 = arith.constant 0 : i32
    return %arg0, %c0_i32 : i32, i32
  }
}

</mosaic_0001>

<llo_original>
// kernel: qrnet_forward.1
$region0: #{qrnet_forward.1}
  #allocation0 [shape = 'u32[]', space=smem, size = 0x4, offset = 0x4, fixed_abs, tag = 'smem constant byte address 0x4 - core index']
  #allocation1 [shape = 'u32[144,128]{1,0:T(1,128)}', space=vmem, size = 0x12000, scoped, tag = 'internal scratch']
  %s0 = inlined_call_operand.vmem [shape: bf16[8,16], index: 0, kind: input, shape index: {}]
  %s1 = inlined_call_operand.vmem [shape: bf16[16,128], index: 1, kind: input, shape index: {}]
  %s2 = inlined_call_operand.vmem [shape: f32[1,128], index: 2, kind: input, shape index: {}]
  %s3 = inlined_call_operand.hbm [shape: bf16[128,128], index: 3, kind: input, shape index: {}]
  %s4 = inlined_call_operand.vmem [shape: f32[1,128], index: 4, kind: input, shape index: {}]
  %s5 = inlined_call_operand.hbm [shape: bf16[128,128], index: 5, kind: input, shape index: {}]
  %s6 = inlined_call_operand.vmem [shape: f32[1,128], index: 6, kind: input, shape index: {}]
  %s7 = inlined_call_operand.hbm [shape: f32[8,128], index: 7, kind: output, shape index: {}]
  %s8 = sld [smem:[#allocation0]]
  $region46: #{qrnet_forward.1} parent=0
    _
  %s10 = ssub.s32 1, %s8
  %s11 = scalar_select 0, %s10, %s8
  $region1: #{qrnet_forward.1} parent=0
    #allocation2 [shape = 'u8[32768]{0}', space=vmem, size = 0x8000, scoped, tag = 'input window, operand 3, single buffered']
    #allocation3 [shape = 's32[1]{0}', space=sflag, size = 0x4, scoped, tag = 'scoped memory for qrnet_forward.1']
    #allocation4 [shape = 's32[1]{0}', space=sflag, size = 0x4, scoped, tag = 'scoped memory for qrnet_forward.1']
    #allocation5 [shape = 'u8[32768]{0}', space=vmem, size = 0x8000, scoped, tag = 'input window, operand 5, single buffered']
    #allocation6 [shape = 's32[1]{0}', space=sflag, size = 0x4, scoped, tag = 'scoped memory for qrnet_forward.1']
    #allocation7 [shape = 'u8[4096]{0}', space=vmem, size = 0x1000, scoped, tag = 'output window, operand 0, single buffered']
    %12 = vsyncpa [#allocation3], 0
    %13 = vsyncpa [#allocation6], 0
    %14 = vsyncpa [#allocation4], 0
    // Predicated region
    $region2: #{qrnet_forward.1} parent=1 // pred_check
      _
    $region3: #{qrnet_forward.1} parent=1 // pred_check_branch
      %16 = sbr.rel (0) target = $region5
    $region4: #{qrnet_forward.1} parent=1 // pred_region
      _
    $region5: #{qrnet_forward.1} parent=1 // pred_fallthru
      _
    // Predicated region
    $region6: #{qrnet_forward.1} parent=1 // pred_check
      _
    $region7: #{qrnet_forward.1} parent=1 // pred_check_branch
      %18 = sbr.rel (0) target = $region9
    $region8: #{qrnet_forward.1} parent=1 // pred_region
      _
    $region9: #{qrnet_forward.1} parent=1 // pred_fallthru
      _
    // Predicated region
    $region10: #{qrnet_forward.1} parent=1 // pred_check
      _
    $region11: #{qrnet_forward.1} parent=1 // pred_check_branch
      %20 = sbr.rel (0) target = $region13
    $region12: #{qrnet_forward.1} parent=1 // pred_region
      _
    $region13: #{qrnet_forward.1} parent=1 // pred_fallthru
      _
    // Predicated region
    $region14: #{qrnet_forward.1} parent=1 // pred_check
      _
    $region15: #{qrnet_forward.1} parent=1 // pred_check_branch
      %22 = sbr.rel (0) target = $region17
    $region16: #{qrnet_forward.1} parent=1 // pred_region
      %s24 = ssub.s32 1024, 1024
      %25 = vsyncadd [#allocation3], %s24
      %s26 = sshll.u32 [#allocation2], 4
      %s27 = int_to_ptr.vmem [resolvable:$true] %s26
      %32 = dma.hbm_to_vmem [thread:$0]  %s3, 1024, %s27, [#allocation3], 64, 64, 4
    $region17: #{qrnet_forward.1} parent=1 // pred_fallthru
      _
    // Predicated region
    $region18: #{qrnet_forward.1} parent=1 // pred_check
      _
    $region19: #{qrnet_forward.1} parent=1 // pred_check_branch
      %34 = sbr.rel (0) target = $region21
    $region20: #{qrnet_forward.1} parent=1 // pred_region
      _
    $region21: #{qrnet_forward.1} parent=1 // pred_fallthru
      _
    // Predicated region
    $region22: #{qrnet_forward.1} parent=1 // pred_check
      _
    $region23: #{qrnet_forward.1} parent=1 // pred_check_branch
      %36 = sbr.rel (0) target = $region25
    $region24: #{qrnet_forward.1} parent=1 // pred_region
      %s38 = ssub.s32 1024, 1024
      %39 = vsyncadd [#allocation6], %s38
      %s40 = sshll.u32 [#allocation5], 4
      %s41 = int_to_ptr.vmem [resolvable:$true] %s40
      %46 = dma.hbm_to_vmem [thread:$0]  %s5, 1024, %s41, [#allocation6], 64, 64, 4
    $region25: #{qrnet_forward.1} parent=1 // pred_fallthru
      _
    // Predicated region
    $region26: #{qrnet_forward.1} parent=1 // pred_check
      _
    $region27: #{qrnet_forward.1} parent=1 // pred_check_branch
      %48 = sbr.rel (0) target = $region29
    $region28: #{qrnet_forward.1} parent=1 // pred_region
      _
    $region29: #{qrnet_forward.1} parent=1 // pred_fallthru
      _
    // Predicated region
    $region30: #{qrnet_forward.1} parent=1 // pred_check
      _
    $region31: #{qrnet_forward.1} parent=1 // pred_check_branch
      %50 = sbr.rel (0) target = $region33
    $region32: #{qrnet_forward.1} parent=1 // pred_region
      %51 = dma.done [#allocation3], 1024
    $region33: #{qrnet_forward.1} parent=1 // pred_fallthru
      _
    // Predicated region
    $region34: #{qrnet_forward.1} parent=1 // pred_check
      _
    $region35: #{qrnet_forward.1} parent=1 // pred_check_branch
      %53 = sbr.rel (0) target = $region37
    $region36: #{qrnet_forward.1} parent=1 // pred_region
      %54 = dma.done [#allocation6], 1024
    $region37: #{qrnet_forward.1} parent=1 // pred_fallthru
      _
    %v56 = vld [vmem:[%s0] sm:$0xf]
    %v57 = vld [vmem:[%s1] sm:$0xf]
    %v58 = vld [vmem:[%s1 + $0x4] sm:$0xf]
    %v59 = vld [vmem:[%s2] sm:$0x1]
    %v61 = vlaneseq
    %v62 = vshrl.u32 %v61, 7
    %v63 = vsub.s32 0, %v62
    %v64 = vrot.slane %v59, %v63
    %v68 = vunpack.c.l.b16 %v57
    %v69 = vunpack.c.l.b16 %v58
    %v70 = vpack.c.b16 %v69, %v68
    %vm72 = vcmask 130048
    %v74 = vsel %vm72, %v56, 0
    %76 = vmatprep.subr.bf16.mxu0 0
    %77 = vmatpush1.bf16.msra.mxu0 0
    %78 = vmatprep.subr.bf16.mxu0 0
    %79 = vmatpush1.bf16.msra.mxu0 0
    %80 = vmatprep.subr.bf16.mxu0 0
    %81 = vmatpush1.bf16.msra.mxu0 0
    %82 = vmatprep.subr.bf16.mxu0 0
    %83 = vmatpush1.bf16.msra.mxu0 0
    %84 = vmatprep.subr.bf16.mxu0 0
    %85 = vmatpush1.bf16.msra.mxu0 0
    %86 = vmatprep.subr.bf16.mxu0 0
    %87 = vmatpush1.bf16.msra.mxu0 0
    %88 = vmatprep.subr.bf16.mxu0 0
    %89 = vmatpush1.bf16.msra.mxu0 0
    %90 = vmatprep.subr.bf16.mxu0 0
    %91 = vmatpush1.bf16.msra.mxu0 %v70
    %92 = vmatprep.subr.bf16.mxu0 0
    %93 = vmatpush2.bf16.msra.mxu0 0
    %94 = vmatprep.subr.bf16.mxu0 0
    %95 = vmatpush2.bf16.msra.mxu0 0
    %96 = vmatprep.subr.bf16.mxu0 0
    %97 = vmatpush2.bf16.msra.mxu0 0
    %98 = vmatprep.subr.bf16.mxu0 0
    %99 = vmatpush2.bf16.msra.mxu0 0
    %100 = vmatprep.subr.bf16.mxu0 0
    %101 = vmatpush2.bf16.msra.mxu0 0
    %102 = vmatprep.subr.bf16.mxu0 0
    %103 = vmatpush2.bf16.msra.mxu0 0
    %104 = vmatprep.subr.bf16.mxu0 0
    %105 = vmatpush2.bf16.msra.mxu0 0
    %106 = vmatprep.subr.bf16.mxu0 0
    %107 = vmatpush2.bf16.msra.mxu0 0
    %108 = vmatprep.mubr.bf16.mxu0 0
    %109 = vmatmul.mubr.bf16.gmra.mxu0 %v74
    %v110 = vpop.f32.mrf.mxu0
    %v111 = vadd.f32 %v64, %v110
    %v112 = vpop.f32.mrf.mxu0
    %v113 = vpop.f32.mrf.mxu0
    %v114 = vpop.f32.mrf.mxu0
    %115 = vdwg.mxu0
    %v116 = vmax.f32 %v111, 0.0
    %v117 = vpack.c.bf16 %v116, %v116
    %v118 = vld [vmem:[#allocation2] sm:$0xf]
    %v119 = vld [vmem:[#allocation2 + $0x4] sm:$0xf]
    %v120 = vld [vmem:[#allocation2 + $0x8] sm:$0xf]
    %v121 = vld [vmem:[#allocation2 + $0xc] sm:$0xf]
    %v122 = vld [vmem:[#allocation2 + $0x10] sm:$0xf]
    %v123 = vld [vmem:[#allocation2 + $0x14] sm:$0xf]
    %v124 = vld [vmem:[#allocation2 + $0x18] sm:$0xf]
    %v125 = vld [vmem:[#allocation2 + $0x1c] sm:$0xf]
    %v126 = vld [vmem:[#allocation2 + $0x20] sm:$0xf]
    %v127 = vld [vmem:[#allocation2 + $0x24] sm:$0xf]
    %v128 = vld [vmem:[#allocation2 + $0x28] sm:$0xf]
    %v129 = vld [vmem:[#allocation2 + $0x2c] sm:$0xf]
    %v130 = vld [vmem:[#allocation2 + $0x30] sm:$0xf]
    %v131 = vld [vmem:[#allocation2 + $0x34] sm:$0xf]
    %v132 = vld [vmem:[#allocation2 + $0x38] sm:$0xf]
    %v133 = vld [vmem:[#allocation2 + $0x3c] sm:$0xf]
    %v134 = vld [vmem:[%s4] sm:$0x1]
    %v136 = vlaneseq
    %v137 = vshrl.u32 %v136, 7
    %v138 = vsub.s32 0, %v137
    %v139 = vrot.slane %v134, %v138
    %v157 = vunpack.c.l.b16 %v118
    %v158 = vunpack.c.l.b16 %v119
    %v159 = vunpack.c.l.b16 %v120
    %v160 = vunpack.c.l.b16 %v121
    %v161 = vunpack.c.l.b16 %v122
    %v162 = vunpack.c.l.b16 %v123
    %v163 = vunpack.c.l.b16 %v124
    %v164 = vunpack.c.l.b16 %v125
    %v165 = vunpack.c.l.b16 %v126
    %v166 = vunpack.c.l.b16 %v127
    %v167 = vunpack.c.l.b16 %v128
    %v168 = vunpack.c.l.b16 %v129
    %v169 = vunpack.c.l.b16 %v130
    %v170 = vunpack.c.l.b16 %v131
    %v171 = vunpack.c.l.b16 %v132
    %v172 = vunpack.c.l.b16 %v133
    %v173 = vpack.c.b16 %v158, %v157
    %v174 = vpack.c.b16 %v160, %v159
    %v175 = vpack.c.b16 %v162, %v161
    %v176 = vpack.c.b16 %v164, %v163
    %v177 = vpack.c.b16 %v166, %v165
    %v178 = vpack.c.b16 %v168, %v167
    %v179 = vpack.c.b16 %v170, %v169
    %v180 = vpack.c.b16 %v172, %v171
    %189 = vmatprep.subr.bf16.mxu0 0
    %190 = vmatpush1.bf16.msra.mxu0 %v180
    %191 = vmatprep.subr.bf16.mxu0 0
    %192 = vmatpush1.bf16.msra.mxu0 %v179
    %193 = vmatprep.subr.bf16.mxu0 0
    %194 = vmatpush1.bf16.msra.mxu0 %v178
    %195 = vmatprep.subr.bf16.mxu0 0
    %196 = vmatpush1.bf16.msra.mxu0 %v177
    %197 = vmatprep.subr.bf16.mxu0 0
    %198 = vmatpush1.bf16.msra.mxu0 %v176
    %199 = vmatprep.subr.bf16.mxu0 0
    %200 = vmatpush1.bf16.msra.mxu0 %v175
    %201 = vmatprep.subr.bf16.mxu0 0
    %202 = vmatpush1.bf16.msra.mxu0 %v174
    %203 = vmatprep.subr.bf16.mxu0 0
    %204 = vmatpush1.bf16.msra.mxu0 %v173
    %205 = vmatprep.subr.bf16.mxu0 0
    %206 = vmatpush2.bf16.msra.mxu0 0
    %207 = vmatprep.subr.bf16.mxu0 0
    %208 = vmatpush2.bf16.msra.mxu0 0
    %209 = vmatprep.subr.bf16.mxu0 0
    %210 = vmatpush2.bf16.msra.mxu0 0
    %211 = vmatprep.subr.bf16.mxu0 0
    %212 = vmatpush2.bf16.msra.mxu0 0
    %213 = vmatprep.subr.bf16.mxu0 0
    %214 = vmatpush2.bf16.msra.mxu0 0
    %215 = vmatprep.subr.bf16.mxu0 0
    %216 = vmatpush2.bf16.msra.mxu0 0
    %217 = vmatprep.subr.bf16.mxu0 0
    %218 = vmatpush2.bf16.msra.mxu0 0
    %219 = vmatprep.subr.bf16.mxu0 0
    %220 = vmatpush2.bf16.msra.mxu0 0
    %221 = vmatprep.mubr.bf16.mxu0 0
    %222 = vmatmul.mubr.bf16.gmra.mxu0 %v117
    %v223 = vpop.f32.mrf.mxu0
    %v224 = vadd.f32 %v139, %v223
    %v225 = vpop.f32.mrf.mxu0
    %v226 = vpop.f32.mrf.mxu0
    %v227 = vpop.f32.mrf.mxu0
    %228 = vdwg.mxu0
    %v229 = vmax.f32 %v224, 0.0
    %v230 = vpack.c.bf16 %v229, %v229
    %v231 = vld [vmem:[#allocation5] sm:$0xf]
    %v232 = vld [vmem:[#allocation5 + $0x4] sm:$0xf]
    %v233 = vld [vmem:[#allocation5 + $0x8] sm:$0xf]
    %v234 = vld [vmem:[#allocation5 + $0xc] sm:$0xf]
    %v235 = vld [vmem:[#allocation5 + $0x10] sm:$0xf]
    %v236 = vld [vmem:[#allocation5 + $0x14] sm:$0xf]
    %v237 = vld [vmem:[#allocation5 + $0x18] sm:$0xf]
    %v238 = vld [vmem:[#allocation5 + $0x1c] sm:$0xf]
    %v239 = vld [vmem:[#allocation5 + $0x20] sm:$0xf]
    %v240 = vld [vmem:[#allocation5 + $0x24] sm:$0xf]
    %v241 = vld [vmem:[#allocation5 + $0x28] sm:$0xf]
    %v242 = vld [vmem:[#allocation5 + $0x2c] sm:$0xf]
    %v243 = vld [vmem:[#allocation5 + $0x30] sm:$0xf]
    %v244 = vld [vmem:[#allocation5 + $0x34] sm:$0xf]
    %v245 = vld [vmem:[#allocation5 + $0x38] sm:$0xf]
    %v246 = vld [vmem:[#allocation5 + $0x3c] sm:$0xf]
    %v247 = vld [vmem:[%s6] sm:$0x1]
    %v249 = vlaneseq
    %v250 = vshrl.u32 %v249, 7
    %v251 = vsub.s32 0, %v250
    %v252 = vrot.slane %v247, %v251
    %v270 = vunpack.c.l.b16 %v231
    %v271 = vunpack.c.l.b16 %v232
    %v272 = vunpack.c.l.b16 %v233
    %v273 = vunpack.c.l.b16 %v234
    %v274 = vunpack.c.l.b16 %v235
    %v275 = vunpack.c.l.b16 %v236
    %v276 = vunpack.c.l.b16 %v237
    %v277 = vunpack.c.l.b16 %v238
    %v278 = vunpack.c.l.b16 %v239
    %v279 = vunpack.c.l.b16 %v240
    %v280 = vunpack.c.l.b16 %v241
    %v281 = vunpack.c.l.b16 %v242
    %v282 = vunpack.c.l.b16 %v243
    %v283 = vunpack.c.l.b16 %v244
    %v284 = vunpack.c.l.b16 %v245
    %v285 = vunpack.c.l.b16 %v246
    %v286 = vpack.c.b16 %v271, %v270
    %v287 = vpack.c.b16 %v273, %v272
    %v288 = vpack.c.b16 %v275, %v274
    %v289 = vpack.c.b16 %v277, %v276
    %v290 = vpack.c.b16 %v279, %v278
    %v291 = vpack.c.b16 %v281, %v280
    %v292 = vpack.c.b16 %v283, %v282
    %v293 = vpack.c.b16 %v285, %v284
    %302 = vmatprep.subr.bf16.mxu0 0
    %303 = vmatpush1.bf16.msra.mxu0 %v293
    %304 = vmatprep.subr.bf16.mxu0 0
    %305 = vmatpush1.bf16.msra.mxu0 %v292
    %306 = vmatprep.subr.bf16.mxu0 0
    %307 = vmatpush1.bf16.msra.mxu0 %v291
    %308 = vmatprep.subr.bf16.mxu0 0
    %309 = vmatpush1.bf16.msra.mxu0 %v290
    %310 = vmatprep.subr.bf16.mxu0 0
    %311 = vmatpush1.bf16.msra.mxu0 %v289
    %312 = vmatprep.subr.bf16.mxu0 0
    %313 = vmatpush1.bf16.msra.mxu0 %v288
    %314 = vmatprep.subr.bf16.mxu0 0
    %315 = vmatpush1.bf16.msra.mxu0 %v287
    %316 = vmatprep.subr.bf16.mxu0 0
    %317 = vmatpush1.bf16.msra.mxu0 %v286
    %318 = vmatprep.subr.bf16.mxu0 0
    %319 = vmatpush2.bf16.msra.mxu0 0
    %320 = vmatprep.subr.bf16.mxu0 0
    %321 = vmatpush2.bf16.msra.mxu0 0
    %322 = vmatprep.subr.bf16.mxu0 0
    %323 = vmatpush2.bf16.msra.mxu0 0
    %324 = vmatprep.subr.bf16.mxu0 0
    %325 = vmatpush2.bf16.msra.mxu0 0
    %326 = vmatprep.subr.bf16.mxu0 0
    %327 = vmatpush2.bf16.msra.mxu0 0
    %328 = vmatprep.subr.bf16.mxu0 0
    %329 = vmatpush2.bf16.msra.mxu0 0
    %330 = vmatprep.subr.bf16.mxu0 0
    %331 = vmatpush2.bf16.msra.mxu0 0
    %332 = vmatprep.subr.bf16.mxu0 0
    %333 = vmatpush2.bf16.msra.mxu0 0
    %334 = vmatprep.mubr.bf16.mxu0 0
    %335 = vmatmul.mubr.bf16.gmra.mxu0 %v230
    %v336 = vpop.f32.mrf.mxu0
    %v337 = vadd.f32 %v252, %v336
    %v338 = vpop.f32.mrf.mxu0
    %v339 = vpop.f32.mrf.mxu0
    %v340 = vpop.f32.mrf.mxu0
    %341 = vdwg.mxu0
    %342 = vst [vmem:[#allocation7] sm:$0xff] %v337
    // Predicated region
    $region38: #{qrnet_forward.1} parent=1 // pred_check
      _
    $region39: #{qrnet_forward.1} parent=1 // pred_check_branch
      %344 = sbr.rel (0) target = $region41
    $region40: #{qrnet_forward.1} parent=1 // pred_region
      %s346 = ssub.s32 128, 128
      %347 = vsyncadd [#allocation4], %s346
      %s349 = sshll.u32 [#allocation7], 4
      %s350 = int_to_ptr.vmem [resolvable:$true] %s349
      %352 = dma.vmem_to_hbm [thread:$0]  %s350, 128, %s7, [#allocation4]
    $region41: #{qrnet_forward.1} parent=1 // pred_fallthru
      _
    // Predicated region
    $region42: #{qrnet_forward.1} parent=1 // pred_check
      _
    $region43: #{qrnet_forward.1} parent=1 // pred_check_branch
      %354 = sbr.rel (0) target = $region45
    $region44: #{qrnet_forward.1} parent=1 // pred_region
      %355 = dma.done [#allocation4], 128
    $region45: #{qrnet_forward.1} parent=1 // pred_fallthru
      _
    %356 = vsyncpa [#allocation3], 1
    %357 = vsyncpa [#allocation6], 1
    %358 = vsyncpa [#allocation4], 1

</llo_original>
